<compile_context>
chip_gen: v5e
topology: v5e:2x2
jax: 0.10.0
libtpu: 0.0.40
codegen_flags: <defaults>
</compile_context>

<pallas_src>
import functools

import jax
import jax.numpy as jnp
from jax.experimental import pallas as pl
from jax.experimental.pallas import tpu as pltpu


def _int_pow(z, gamma):
    """z ** gamma using VPU multiplies for small integer gamma (no EUP)."""
    g = float(gamma)
    if g == int(g) and 0 < int(g) <= 16:
        out = z
        for _ in range(int(g) - 1):
            out = out * z
        return out
    return jnp.power(z, jnp.float32(gamma))


def _focal_math(x_ref, t_ref, *, margin, gamma, eps, n_rows):
    """Shared math: returns (loss_tile, pos_partial[1,8,C], neg_partial[1,8,C])."""
    x = x_ref[...].astype(jnp.float32)
    t = t_ref[...].astype(jnp.float32)
    tr, c = x.shape

    pos = t > margin
    neg = t < margin
    labeled = jnp.logical_or(pos, neg)       # unlabeled (== margin) -> zero loss

    p = jax.nn.sigmoid(x)                    # 1 sigmoid (EUP)
    q = jnp.where(pos, p, 1.0 - p)           # prob assigned to the labeled side
    base = -jnp.log(jnp.maximum(q, eps))     # single log (clamp form = bit parity)

    if gamma > 0:
        w = _int_pow(1.0 - q, gamma)         # pos: (1-p)^g ; neg: p^g  (VPU only)
        loss = jnp.where(labeled, base * w, 0.0)
    else:
        loss = jnp.where(labeled, base, 0.0)

    # Row-validity mask for the ragged last tile (no wrapper-side padding).
    # Use select (jnp.where), NOT multiply, so junk NaN/Inf rows cannot leak.
    ragged = (n_rows % tr) != 0
    if ragged:
        row_ids = (jax.lax.broadcasted_iota(jnp.int32, (tr, c), 0)
                   + pl.program_id(0) * tr)
        valid = row_ids < n_rows
        pos_m = jnp.logical_and(valid, pos)
        neg_m = jnp.logical_and(valid, jnp.logical_not(pos))
    else:
        pos_m = pos
        neg_m = jnp.logical_not(pos)

    pos_l = jnp.where(pos_m, loss, 0.0)
    neg_l = jnp.where(neg_m, loss, 0.0)

    # Lane-dense (8, C) partial sums per grid step (VPU adds only); the final
    # scalar reduction over (grid, 8, C) happens once in the wrapper.
    pos_part = jnp.sum(pos_l.reshape(tr // 8, 8, c), axis=0)[None]
    neg_part = jnp.sum(neg_l.reshape(tr // 8, 8, c), axis=0)[None]
    return loss, pos_part, neg_part


def _focal_elem_kernel(x_ref, t_ref, loss_ref, pos_part_ref, neg_part_ref,
                       *, margin, gamma, eps, n_rows):
    loss, pos_part, neg_part = _focal_math(
        x_ref, t_ref, margin=margin, gamma=gamma, eps=eps, n_rows=n_rows)
    loss_ref[...] = loss.astype(loss_ref.dtype)
    pos_part_ref[...] = pos_part
    neg_part_ref[...] = neg_part


def _focal_sums_kernel(x_ref, t_ref, pos_part_ref, neg_part_ref,
                       *, margin, gamma, eps, n_rows):
    _, pos_part, neg_part = _focal_math(
        x_ref, t_ref, margin=margin, gamma=gamma, eps=eps, n_rows=n_rows)
    pos_part_ref[...] = pos_part
    neg_part_ref[...] = neg_part


def focal_loss(inputs, targets, *, margin=0.0, gamma=3, eps=1e-8,
               reduce=None, size_average=None, tile_rows=None,
               loss_dtype=jnp.float32, vmem_limit_bytes=32 * 1024 * 1024):
    """Returns (loss, pos_sum, neg_sum).

    `loss` follows the PyTorch module's return value (elementwise if `reduce` is
    falsy, else sum / mean).  `pos_sum` / `neg_sum` are the scalars the module
    pushes into loss_meter['pos'] / loss_meter['neg'].
    """
    assert inputs.shape == targets.shape and inputs.ndim == 2
    n, c = inputs.shape
    sums_only = bool(reduce)

    # --- tile selection: ~3 MiB double-buffered working set (dtype-aware) ---
    if tile_rows is None:
        budget_bytes = 3 * 1024 * 1024
        x_b = jnp.dtype(inputs.dtype).itemsize
        t_b = jnp.dtype(targets.dtype).itemsize
        o_b = 0 if sums_only else jnp.dtype(loss_dtype).itemsize
        bytes_per_row = 2 * c * (x_b + t_b + o_b)     # 2x: double-buffered pipeline
        tile_rows = max(8, (budget_bytes // max(bytes_per_row, 1)) // 8 * 8)
    # Cap so the grid has >= ~4 steps (v7x megacore has work to split across TCs).
    cap = max(8, ((pl.cdiv(n, 4) + 7) // 8) * 8)
    tile_rows = int(max(8, min((int(tile_rows) // 8) * 8, cap)))

    grid = (pl.cdiv(n, tile_rows),)
    kernel_kwargs = dict(margin=float(margin), gamma=gamma, eps=float(eps), n_rows=n)

    in_specs = [
        pl.BlockSpec((tile_rows, c), lambda i: (i, 0)),
        pl.BlockSpec((tile_rows, c), lambda i: (i, 0)),
    ]
    part_shape = jax.ShapeDtypeStruct((grid[0], 8, c), jnp.float32)
    part_spec = pl.BlockSpec((1, 8, c), lambda i: (i, 0, 0))
    compiler_params = pltpu.CompilerParams(
        dimension_semantics=("parallel",),   # no cross-step state
        vmem_limit_bytes=vmem_limit_bytes,
    )

    if sums_only:
        # reduce=True: never materialize the (N, C) loss — sums only.
        pos_part, neg_part = pl.pallas_call(
            functools.partial(_focal_sums_kernel, **kernel_kwargs),
            out_shape=(part_shape, part_shape),
            grid_spec=pltpu.PrefetchScalarGridSpec(
                num_scalar_prefetch=0,
                grid=grid,
                in_specs=in_specs,
                out_specs=[part_spec, part_spec],
            ),
            compiler_params=compiler_params,
        )(inputs, targets)
        pos_sum = jnp.sum(pos_part)
        neg_sum = jnp.sum(neg_part)
        tot_sum = pos_sum + neg_sum
        if size_average:
            return tot_sum / (n * c), pos_sum, neg_sum
        return tot_sum, pos_sum, neg_sum

    loss, pos_part, neg_part = pl.pallas_call(
        functools.partial(_focal_elem_kernel, **kernel_kwargs),
        out_shape=(
            jax.ShapeDtypeStruct((n, c), loss_dtype),
            part_shape,
            part_shape,
        ),
        grid_spec=pltpu.PrefetchScalarGridSpec(
            num_scalar_prefetch=0,
            grid=grid,
            in_specs=in_specs,
            out_specs=[
                pl.BlockSpec((tile_rows, c), lambda i: (i, 0)),
                part_spec,
                part_spec,
            ],
        ),
        compiler_params=compiler_params,
    )(inputs, targets)

    pos_sum = jnp.sum(pos_part)
    neg_sum = jnp.sum(neg_part)
    return loss, pos_sum, neg_sum


def _focal_ref(x, t, margin=0.0, gamma=3, eps=1e-8):
    """Faithful JAX port of the PyTorch FocalLoss.forward for validation."""
    x = x.astype(jnp.float32)
    t = t.astype(jnp.float32)
    pos = (t > margin).astype(jnp.float32)
    neg = (t < margin).astype(jnp.float32)
    p = jax.nn.sigmoid(x)
    loss_pos = pos * jnp.log(jnp.maximum(p, eps))
    loss_neg = neg * jnp.log(jnp.maximum(1.0 - p, eps))
    loss = -(loss_pos + loss_neg)
    if gamma > 0:
        prob = p * pos + (1.0 - p) * neg
        loss = loss * (1.0 - prob) ** gamma
    pos_sum = jnp.sum(jnp.where(pos > 0.5, loss, 0.0))
    neg_sum = jnp.sum(jnp.where(pos <= 0.5, loss, 0.0))
    return loss, pos_sum, neg_sum


if __name__ == "__main__":
    key = jax.random.PRNGKey(0)
    k1, k2 = jax.random.split(key)

    # (BatchSize, classNum); N=20 exercises the ragged (partial) last tile.
    N, C = 20, 128
    logits = jax.random.normal(k1, (N, C), dtype=jnp.float32)
    u = jax.random.uniform(k2, (N, C))
    # Targets in {-1, 0, +1}: +1 positive, -1 negative, 0 unknown (zero loss).
    targets = jnp.where(u < 0.25, 1.0, jnp.where(u < 0.5, -1.0, 0.0)).astype(jnp.float32)

    loss, pos_sum, neg_sum = focal_loss(logits, targets)   # default reduce=None
    jax.block_until_ready((loss, pos_sum, neg_sum))

    loss_ref, pos_ref, neg_ref = _focal_ref(logits, targets)
    assert loss.shape == (N, C) and loss.dtype == jnp.float32
    assert jnp.allclose(loss, loss_ref, rtol=1e-5, atol=1e-5)
    assert jnp.allclose(pos_sum, pos_ref, rtol=1e-4, atol=1e-3)
    assert jnp.allclose(neg_sum, neg_ref, rtol=1e-4, atol=1e-3)

    # reduce=True path: sums-only kernel, no (N, C) loss ever written to HBM.
    total, _, _ = focal_loss(logits, targets, reduce=True)
    mean, _, _ = focal_loss(logits, targets, reduce=True, size_average=True)
    jax.block_until_ready((total, mean))
    assert jnp.allclose(total, jnp.sum(loss_ref), rtol=1e-4, atol=1e-3)
    assert jnp.allclose(mean, jnp.mean(loss_ref), rtol=1e-4, atol=1e-5)

    # Narrow-dtype path: bf16 logits/targets stream half the input bytes; kernel
    # upcasts internally so results match the reference on the bf16-cast inputs.
    logits_bf = logits.astype(jnp.bfloat16)
    targets_bf = targets.astype(jnp.bfloat16)       # {-1,0,1} exact in bf16
    loss_bf, pos_bf, neg_bf = focal_loss(logits_bf, targets_bf)
    jax.block_until_ready((loss_bf, pos_bf, neg_bf))
    loss_ref_bf, pos_ref_bf, neg_ref_bf = _focal_ref(
        logits_bf.astype(jnp.float32), targets_bf.astype(jnp.float32))
    assert jnp.allclose(loss_bf, loss_ref_bf, rtol=1e-5, atol=1e-5)
    assert jnp.allclose(pos_bf, pos_ref_bf, rtol=1e-4, atol=1e-3)
    assert jnp.allclose(neg_bf, neg_ref_bf, rtol=1e-4, atol=1e-3)

    # TODO(synk): loss_meter['pos']/['neg'].update(...) is host-side bookkeeping;
    # the kernel returns pos_sum/neg_sum for the caller to push into its meter.
    print("KERNEL_OK")
</pallas_src>

<mosaic_0001>
module attributes {stable_mosaic.version = 11 : i64} {
  func.func @_focal_elem_kernel(%arg0: i32, %arg1: memref<8x128xf32, #tpu.memory_space<vmem>>, %arg2: memref<8x128xf32, #tpu.memory_space<vmem>>, %arg3: memref<8x128xf32, #tpu.memory_space<vmem>>, %arg4: memref<1x8x128xf32, #tpu.memory_space<vmem>>, %arg5: memref<1x8x128xf32, #tpu.memory_space<vmem>>) attributes {dimension_semantics = [#tpu.dimension_semantics<parallel>], iteration_bounds = array<i64: 3>, scalar_prefetch = 0 : i64, scratch_operands = 0 : i64, tpu.core_type = #tpu.core_type<tc>, window_params = [{transform_indices = @transform_0, window_bounds = array<i64: 8, 128>}, {transform_indices = @transform_1, window_bounds = array<i64: 8, 128>}, {transform_indices = @transform_2, window_bounds = array<i64: 8, 128>}, {transform_indices = @transform_3, window_bounds = array<i64: 1, 8, 128>}, {transform_indices = @transform_4, window_bounds = array<i64: 1, 8, 128>}]} {
    %c0 = arith.constant 0 : index
    %c0_0 = arith.constant 0 : index
    %0 = vector.load %arg1[%c0, %c0_0] : memref<8x128xf32, #tpu.memory_space<vmem>>, vector<8x128xf32>
    %c0_1 = arith.constant 0 : index
    %c0_2 = arith.constant 0 : index
    %1 = vector.load %arg2[%c0_1, %c0_2] : memref<8x128xf32, #tpu.memory_space<vmem>>, vector<8x128xf32>
    %cst = arith.constant 0.000000e+00 : f32
    %2 = vector.broadcast %cst : f32 to vector<8x128xf32>
    %3 = arith.cmpf ogt, %1, %2 : vector<8x128xf32>
    %cst_3 = arith.constant 0.000000e+00 : f32
    %4 = vector.broadcast %cst_3 : f32 to vector<8x128xf32>
    %5 = arith.cmpf olt, %1, %4 : vector<8x128xf32>
    %6 = arith.ori %3, %5 : vector<8x128xi1>
    %7 = arith.negf %0 : vector<8x128xf32>
    %8 = math.exp %7 : vector<8x128xf32>
    %cst_4 = arith.constant 1.000000e+00 : f32
    %9 = vector.broadcast %cst_4 : f32 to vector<8x128xf32>
    %10 = arith.addf %9, %8 : vector<8x128xf32>
    %11 = arith.divf %9, %10 : vector<8x128xf32>
    %cst_5 = arith.constant 1.000000e+00 : f32
    %12 = vector.broadcast %cst_5 : f32 to vector<8x128xf32>
    %13 = arith.subf %12, %11 : vector<8x128xf32>
    %14 = arith.select %3, %11, %13 : vector<8x128xi1>, vector<8x128xf32>
    %cst_6 = arith.constant 9.99999993E-9 : f32
    %15 = vector.broadcast %cst_6 : f32 to vector<8x128xf32>
    %16 = arith.maximumf %14, %15 : vector<8x128xf32>
    %17 = math.log %16 : vector<8x128xf32>
    %cst_7 = arith.constant 0.000000e+00 : f32
    %18 = vector.broadcast %cst_7 : f32 to vector<8x128xf32>
    %19 = arith.subf %18, %17 : vector<8x128xf32>
    %cst_8 = arith.constant 1.000000e+00 : f32
    %20 = vector.broadcast %cst_8 : f32 to vector<8x128xf32>
    %21 = arith.subf %20, %14 : vector<8x128xf32>
    %22 = arith.mulf %21, %21 : vector<8x128xf32>
    %23 = arith.mulf %22, %21 : vector<8x128xf32>
    %24 = arith.mulf %19, %23 : vector<8x128xf32>
    %cst_9 = arith.constant 0.000000e+00 : f32
    %25 = vector.broadcast %cst_9 : f32 to vector<8x128xf32>
    %26 = arith.select %6, %24, %25 : vector<8x128xi1>, vector<8x128xf32>
    %27 = tpu.iota {dimensions = array<i32: 0>} : vector<8x128xi32>
    %c8_i32 = arith.constant 8 : i32
    %28 = arith.muli %arg0, %c8_i32 : i32
    %29 = vector.broadcast %28 : i32 to vector<8x128xi32>
    %30 = arith.addi %27, %29 : vector<8x128xi32>
    %c20_i32 = arith.constant 20 : i32
    %31 = vector.broadcast %c20_i32 : i32 to vector<8x128xi32>
    %32 = arith.cmpi slt, %30, %31 : vector<8x128xi32>
    %33 = arith.andi %32, %3 : vector<8x128xi1>
    %cst_10 = arith.constant dense<true> : vector<8x128xi1>
    %34 = arith.xori %3, %cst_10 : vector<8x128xi1>
    %35 = arith.andi %32, %34 : vector<8x128xi1>
    %cst_11 = arith.constant 0.000000e+00 : f32
    %36 = vector.broadcast %cst_11 : f32 to vector<8x128xf32>
    %37 = arith.select %33, %26, %36 : vector<8x128xi1>, vector<8x128xf32>
    %cst_12 = arith.constant 0.000000e+00 : f32
    %38 = vector.broadcast %cst_12 : f32 to vector<8x128xf32>
    %39 = arith.select %35, %26, %38 : vector<8x128xi1>, vector<8x128xf32>
    %40 = vector.shape_cast %37 : vector<8x128xf32> to vector<1x8x128xf32>
    %cst_13 = arith.constant dense<0.000000e+00> : vector<8x128xf32>
    %41 = vector.multi_reduction <add>, %40, %cst_13 [0] : vector<1x8x128xf32> to vector<8x128xf32>
    %42 = vector.shape_cast %41 : vector<8x128xf32> to vector<1x8x128xf32>
    %43 = vector.shape_cast %39 : vector<8x128xf32> to vector<1x8x128xf32>
    %cst_14 = arith.constant dense<0.000000e+00> : vector<8x128xf32>
    %44 = vector.multi_reduction <add>, %43, %cst_14 [0] : vector<1x8x128xf32> to vector<8x128xf32>
    %45 = vector.shape_cast %44 : vector<8x128xf32> to vector<1x8x128xf32>
    %c0_15 = arith.constant 0 : index
    %c0_16 = arith.constant 0 : index
    %46 = vector.load %arg3[%c0_15, %c0_16] : memref<8x128xf32, #tpu.memory_space<vmem>>, vector<8x128xf32>
    tpu.vector_store %arg3[%c0_15, %c0_16], %26 {strides = array<i32>} : memref<8x128xf32, #tpu.memory_space<vmem>>, vector<8x128xf32>,
    %c0_17 = arith.constant 0 : index
    %c0_18 = arith.constant 0 : index
    %c0_19 = arith.constant 0 : index
    %47 = vector.load %arg4[%c0_17, %c0_18, %c0_19] : memref<1x8x128xf32, #tpu.memory_space<vmem>>, vector<1x8x128xf32>
    tpu.vector_store %arg4[%c0_17, %c0_18, %c0_19], %42 {strides = array<i32>} : memref<1x8x128xf32, #tpu.memory_space<vmem>>, vector<1x8x128xf32>,
    %c0_20 = arith.constant 0 : index
    %c0_21 = arith.constant 0 : index
    %c0_22 = arith.constant 0 : index
    %48 = vector.load %arg5[%c0_20, %c0_21, %c0_22] : memref<1x8x128xf32, #tpu.memory_space<vmem>>, vector<1x8x128xf32>
    tpu.vector_store %arg5[%c0_20, %c0_21, %c0_22], %45 {strides = array<i32>} : memref<1x8x128xf32, #tpu.memory_space<vmem>>, vector<1x8x128xf32>,
    return
  }
  func.func @transform_0(%arg0: i32) -> (i32, i32) {
    %c0_i32 = arith.constant 0 : i32
    %c0_i32_0 = arith.constant 0 : i32
    return %arg0, %c0_i32 : i32, i32
  }
  func.func @transform_1(%arg0: i32) -> (i32, i32) {
    %c0_i32 = arith.constant 0 : i32
    %c0_i32_0 = arith.constant 0 : i32
    return %arg0, %c0_i32 : i32, i32
  }
  func.func @transform_2(%arg0: i32) -> (i32, i32) {
    %c0_i32 = arith.constant 0 : i32
    %c0_i32_0 = arith.constant 0 : i32
    return %arg0, %c0_i32 : i32, i32
  }
  func.func @transform_3(%arg0: i32) -> (i32, i32, i32) {
    %c0_i32 = arith.constant 0 : i32
    %c0_i32_0 = arith.constant 0 : i32
    %c0_i32_1 = arith.constant 0 : i32
    return %arg0, %c0_i32, %c0_i32_0 : i32, i32, i32
  }
  func.func @transform_4(%arg0: i32) -> (i32, i32, i32) {
    %c0_i32 = arith.constant 0 : i32
    %c0_i32_0 = arith.constant 0 : i32
    %c0_i32_1 = arith.constant 0 : i32
    return %arg0, %c0_i32, %c0_i32_0 : i32, i32, i32
  }
}

</mosaic_0001>

<llo_original>
// kernel: tpu_custom_call.1
$region0: #{tpu_custom_call.1}
  #allocation0 [shape = 'u32[]', space=smem, size = 0x4, offset = 0x4, fixed_abs, tag = 'smem constant byte address 0x4 - core index']
  #allocation1 [shape = 'u32[72,128]{1,0:T(1,128)}', space=vmem, size = 0x9000, scoped, tag = 'internal scratch']
  %s0 = inlined_call_operand.hbm [shape: f32[20,128], index: 0, kind: input, shape index: {}]
  %s1 = inlined_call_operand.hbm [shape: f32[20,128], index: 1, kind: input, shape index: {}]
  %s2 = inlined_call_operand.hbm [shape: f32[20,128], index: 2, kind: output, shape index: {0}]
  %s3 = inlined_call_operand.hbm [shape: f32[3,8,128], index: 3, kind: output, shape index: {1}]
  %s4 = inlined_call_operand.hbm [shape: f32[3,8,128], index: 4, kind: output, shape index: {2}]
  %5 = xla_tuple %s2, %s3, %s4
  %s6 = sld [smem:[#allocation0]]
  $region65: #{tpu_custom_call.1} parent=0
    _
  %s8 = ssub.s32 1, %s6
  %s9 = scalar_select 0, %s8, %s6
  $region1: #{tpu_custom_call.1} parent=0
    #allocation2 [shape = 'u8[8192]{0}', space=vmem, size = 0x2000, scoped, tag = 'input window, operand 0']
    #allocation3 [shape = 's32[2]{0}', space=sflag, size = 0x8, scoped, tag = 'scoped memory for tpu_custom_call.1']
    #allocation4 [shape = 's32[2]{0}', space=sflag, size = 0x8, scoped, tag = 'scoped memory for tpu_custom_call.1']
    #allocation5 [shape = 'u8[8192]{0}', space=vmem, size = 0x2000, scoped, tag = 'input window, operand 1']
    #allocation6 [shape = 's32[2]{0}', space=sflag, size = 0x8, scoped, tag = 'scoped memory for tpu_custom_call.1']
    #allocation7 [shape = 'u8[8192]{0}', space=vmem, size = 0x2000, scoped, tag = 'output window, operand 0']
    #allocation8 [shape = 'u8[8192]{0}', space=vmem, size = 0x2000, scoped, tag = 'output window, operand 1']
    #allocation9 [shape = 's32[2]{0}', space=sflag, size = 0x8, scoped, tag = 'scoped memory for tpu_custom_call.1']
    #allocation10 [shape = 'u8[8192]{0}', space=vmem, size = 0x2000, scoped, tag = 'output window, operand 2']
    %10 = vsyncpa [#allocation3], 0
    %s11 = scalar_lea.sflag [#allocation3], 1
    %12 = vsyncpa %s11, 0
    %13 = vsyncpa [#allocation6], 0
    %s14 = scalar_lea.sflag [#allocation6], 1
    %15 = vsyncpa %s14, 0
    %16 = vsyncpa [#allocation4], 0
    %s17 = scalar_lea.sflag [#allocation4], 1
    %18 = vsyncpa %s17, 0
    %19 = vsyncpa [#allocation9], 0
    %s20 = scalar_lea.sflag [#allocation9], 1
    %21 = vsyncpa %s20, 0
    loop: start=0, step=1, limit=5
    $region2: #{tpu_custom_call.1} parent=1 // loop_pre_header
      _
    $region3: #{tpu_custom_call.1} parent=1 // loop_header
      %s23 = sphi 0, %s27
      %p24 = scmp.ge.s32.totalorder %s23, 5
      %s33 = sphi 0, %s35
      %s36 = sphi 0, %s33
      %s37 = sphi 0, %s36
      %s53 = sphi 0, %s37
      %s59 = sphi 0, %s61
      %s62 = sphi 0, %s59
      %s63 = sphi 0, %s62
      %s79 = sphi 0, %s63
      %s85 = sphi 0, %s87
      %s88 = sphi 0, %s85
      %s89 = sphi 0, %s88
      %s105 = sphi 0, %s89
      %s111 = sphi 0, %s113
      %s114 = sphi 0, %s111
      %s115 = sphi 0, %s114
      %s131 = sphi 0, %s115
      %s137 = sphi 0, %s139
      %s140 = sphi 0, %s137
      %s141 = sphi 0, %s140
      %s157 = sphi 0, %s141
    $region4: #{tpu_custom_call.1} parent=1 // loop_header_branch
      %26 = sbr.rel (%p24) target = $region8
    $region5: #{tpu_custom_call.1} parent=1 // loop_body
      %s28 = ssub.s32 %s23, 1
      %s29 = ssub.s32 %s23, 2
      %s30 = sadd.s32 %s23, 1
      %s31 = ssub.s32 %s23, %s30
      %p32 = scmp.eq.s32.totalorder %s31, 0
      %s34 = sadd.s32 %s33, 1
      %s35 = scalar_select %p32, %s33, %s34
      %p38 = pneg %p32
      %p39 = scmp.eq.s32.totalorder %s23, 2
      %p40 = por %p38, %p39
      %p41 = scmp.ne.s32.totalorder %s33, %s36
      %p42 = scmp.eq.s32.totalorder %s23, 0
      %p43 = por %p41, %p42
      %p44 = scmp.ne.s32.totalorder %s33, %s36
      %p45 = scmp.eq.s32.totalorder %s28, 2
      %p46 = por %p44, %p45
      %p47 = scmp.ne.s32.totalorder %s36, %s37
      %p48 = scmp.eq.s32.totalorder %s28, 0
      %p49 = por %p47, %p48
      %p50 = scmp.ne.s32.totalorder %s36, %s37
      %p51 = scmp.eq.s32.totalorder %s29, 2
      %p52 = por %p50, %p51
      %p54 = scmp.ne.s32.totalorder %s37, %s53
      %p55 = scmp.eq.s32.totalorder %s29, 0
      %p56 = por %p54, %p55
      %s57 = ssub.s32 %s23, %s30
      %p58 = scmp.eq.s32.totalorder %s57, 0
      %s60 = sadd.s32 %s59, 1
      %s61 = scalar_select %p58, %s59, %s60
      %p64 = pneg %p58
      %p65 = scmp.eq.s32.totalorder %s23, 2
      %p66 = por %p64, %p65
      %p67 = scmp.ne.s32.totalorder %s59, %s62
      %p68 = scmp.eq.s32.totalorder %s23, 0
      %p69 = por %p67, %p68
      %p70 = scmp.ne.s32.totalorder %s59, %s62
      %p71 = scmp.eq.s32.totalorder %s28, 2
      %p72 = por %p70, %p71
      %p73 = scmp.ne.s32.totalorder %s62, %s63
      %p74 = scmp.eq.s32.totalorder %s28, 0
      %p75 = por %p73, %p74
      %p76 = scmp.ne.s32.totalorder %s62, %s63
      %p77 = scmp.eq.s32.totalorder %s29, 2
      %p78 = por %p76, %p77
      %p80 = scmp.ne.s32.totalorder %s63, %s79
      %p81 = scmp.eq.s32.totalorder %s29, 0
      %p82 = por %p80, %p81
      %s83 = ssub.s32 %s23, %s30
      %p84 = scmp.eq.s32.totalorder %s83, 0
      %s86 = sadd.s32 %s85, 1
      %s87 = scalar_select %p84, %s85, %s86
      %p90 = pneg %p84
      %p91 = scmp.eq.s32.totalorder %s23, 2
      %p92 = por %p90, %p91
      %p93 = scmp.ne.s32.totalorder %s85, %s88
      %p94 = scmp.eq.s32.totalorder %s23, 0
      %p95 = por %p93, %p94
      %p96 = scmp.ne.s32.totalorder %s85, %s88
      %p97 = scmp.eq.s32.totalorder %s28, 2
      %p98 = por %p96, %p97
      %p99 = scmp.ne.s32.totalorder %s88, %s89
      %p100 = scmp.eq.s32.totalorder %s28, 0
      %p101 = por %p99, %p100
      %p102 = scmp.ne.s32.totalorder %s88, %s89
      %p103 = scmp.eq.s32.totalorder %s29, 2
      %p104 = por %p102, %p103
      %p106 = scmp.ne.s32.totalorder %s89, %s105
      %p107 = scmp.eq.s32.totalorder %s29, 0
      %p108 = por %p106, %p107
      %s109 = ssub.s32 %s23, %s30
      %p110 = scmp.eq.s32.totalorder %s109, 0
      %s112 = sadd.s32 %s111, 1
      %s113 = scalar_select %p110, %s111, %s112
      %p116 = pneg %p110
      %p117 = scmp.eq.s32.totalorder %s23, 2
      %p118 = por %p116, %p117
      %p119 = scmp.ne.s32.totalorder %s111, %s114
      %p120 = scmp.eq.s32.totalorder %s23, 0
      %p121 = por %p119, %p120
      %p122 = scmp.ne.s32.totalorder %s111, %s114
      %p123 = scmp.eq.s32.totalorder %s28, 2
      %p124 = por %p122, %p123
      %p125 = scmp.ne.s32.totalorder %s114, %s115
      %p126 = scmp.eq.s32.totalorder %s28, 0
      %p127 = por %p125, %p126
      %p128 = scmp.ne.s32.totalorder %s114, %s115
      %p129 = scmp.eq.s32.totalorder %s29, 2
      %p130 = por %p128, %p129
      %p132 = scmp.ne.s32.totalorder %s115, %s131
      %p133 = scmp.eq.s32.totalorder %s29, 0
      %p134 = por %p132, %p133
      %s135 = ssub.s32 %s23, %s30
      %p136 = scmp.eq.s32.totalorder %s135, 0
      %s138 = sadd.s32 %s137, 1
      %s139 = scalar_select %p136, %s137, %s138
      %p142 = pneg %p136
      %p143 = scmp.eq.s32.totalorder %s23, 2
      %p144 = por %p142, %p143
      %p145 = scmp.ne.s32.totalorder %s137, %s140
      %p146 = scmp.eq.s32.totalorder %s23, 0
      %p147 = por %p145, %p146
      %p148 = scmp.ne.s32.totalorder %s137, %s140
      %p149 = scmp.eq.s32.totalorder %s28, 2
      %p150 = por %p148, %p149
      %p151 = scmp.ne.s32.totalorder %s140, %s141
      %p152 = scmp.eq.s32.totalorder %s28, 0
      %p153 = por %p151, %p152
      %p154 = scmp.ne.s32.totalorder %s140, %s141
      %p155 = scmp.eq.s32.totalorder %s29, 2
      %p156 = por %p154, %p155
      %p158 = scmp.ne.s32.totalorder %s141, %s157
      %p159 = scmp.eq.s32.totalorder %s29, 0
      %p160 = por %p158, %p159
      %p161 = scmp.le.s32.totalorder 1, %s23
      %p162 = scmp.lt.s32.totalorder %s23, 4
      %p163 = pnand %p161, %p162
      %p164 = pneg %p163
      // Predicated region
      $region9: #{tpu_custom_call.1} parent=5 // pred_check
        _
      $region10: #{tpu_custom_call.1} parent=5 // pred_check_branch
        %166 = sbr.rel (%p163) target = $region12
      $region11: #{tpu_custom_call.1} parent=5 // pred_region
        %s167 = ssub.s32 %s23, 1
      $region12: #{tpu_custom_call.1} parent=5 // pred_fallthru
        _
      %p168 = scmp.lt.s32.totalorder %s23, 3
      // Predicated region
      $region13: #{tpu_custom_call.1} parent=5 // pred_check
        %p169 = pneg %p168
      $region14: #{tpu_custom_call.1} parent=5 // pred_check_branch
        %171 = sbr.rel (%p169) target = $region16
      $region15: #{tpu_custom_call.1} parent=5 // pred_region
        // Predicated region
        $region17: #{tpu_custom_call.1} parent=15 // pred_check
          %p172 = pneg %p43
        $region18: #{tpu_custom_call.1} parent=15 // pred_check_branch
          %174 = sbr.rel (%p172) target = $region20
        $region19: #{tpu_custom_call.1} parent=15 // pred_region
          %s175 = sand.u32 %s33, 1
          %s176 = scalar_lea.sflag [#allocation3], %s175
          %s177 = sand.u32 %s33, 1
          %s178 = smul.addr %s177, 8
          %s179 = scalar_lea.vmem [#allocation2], %s178
          %181 = vsyncadd %s176, 0
          %s182 = smul.addr %s23, 8
          %s183 = scalar_lea.hbm %s0, %s182
          %s185 = sshll.u32 %s183, 4
          %s186 = int_to_ptr.hbm [resolvable:$true] %s185
          %s187 = sshll.u32 %s179, 4
          %s188 = int_to_ptr.vmem [resolvable:$true] %s187
          %190 = dma.hbm_to_vmem [thread:$0]  %s186, 128, %s188, %s176
        $region20: #{tpu_custom_call.1} parent=15 // pred_fallthru
          _
        // Predicated region
        $region21: #{tpu_custom_call.1} parent=15 // pred_check
          %p191 = pneg %p69
        $region22: #{tpu_custom_call.1} parent=15 // pred_check_branch
          %193 = sbr.rel (%p191) target = $region24
        $region23: #{tpu_custom_call.1} parent=15 // pred_region
          %s194 = sand.u32 %s59, 1
          %s195 = scalar_lea.sflag [#allocation6], %s194
          %s196 = sand.u32 %s59, 1
          %s197 = smul.addr %s196, 8
          %s198 = scalar_lea.vmem [#allocation5], %s197
          %200 = vsyncadd %s195, 0
          %s201 = smul.addr %s23, 8
          %s202 = scalar_lea.hbm %s1, %s201
          %s204 = sshll.u32 %s202, 4
          %s205 = int_to_ptr.hbm [resolvable:$true] %s204
          %s206 = sshll.u32 %s198, 4
          %s207 = int_to_ptr.vmem [resolvable:$true] %s206
          %209 = dma.hbm_to_vmem [thread:$0]  %s205, 128, %s207, %s195
        $region24: #{tpu_custom_call.1} parent=15 // pred_fallthru
          _
      $region16: #{tpu_custom_call.1} parent=5 // pred_fallthru
        _
      %p210 = scmp.le.s32.totalorder 1, %s23
      %p211 = scmp.lt.s32.totalorder %s23, 4
      %p212 = pnand %p210, %p211
      %p213 = pneg %p212
      // Predicated region
      $region25: #{tpu_custom_call.1} parent=5 // pred_check
        _
      $region26: #{tpu_custom_call.1} parent=5 // pred_check_branch
        %215 = sbr.rel (%p212) target = $region28
      $region27: #{tpu_custom_call.1} parent=5 // pred_region
        %s216 = ssub.s32 %s23, 1
        %s217 = sand.u32 %s36, 1
        %s218 = scalar_lea.sflag [#allocation3], %s217
        %s219 = sand.u32 %s36, 1
        %s220 = smul.addr %s219, 8
        %s221 = scalar_lea.vmem [#allocation2], %s220
        // Predicated region
        $region29: #{tpu_custom_call.1} parent=27 // pred_check
          %p222 = pneg %p49
        $region30: #{tpu_custom_call.1} parent=27 // pred_check_branch
          %224 = sbr.rel (%p222) target = $region32
        $region31: #{tpu_custom_call.1} parent=27 // pred_region
          %226 = dma.done %s218, 128
        $region32: #{tpu_custom_call.1} parent=27 // pred_fallthru
          _
        %s227 = sand.u32 %s62, 1
        %s228 = scalar_lea.sflag [#allocation6], %s227
        %s229 = sand.u32 %s62, 1
        %s230 = smul.addr %s229, 8
        %s231 = scalar_lea.vmem [#allocation5], %s230
        // Predicated region
        $region33: #{tpu_custom_call.1} parent=27 // pred_check
          %p232 = pneg %p75
        $region34: #{tpu_custom_call.1} parent=27 // pred_check_branch
          %234 = sbr.rel (%p232) target = $region36
        $region35: #{tpu_custom_call.1} parent=27 // pred_region
          %236 = dma.done %s228, 128
        $region36: #{tpu_custom_call.1} parent=27 // pred_fallthru
          _
        %s237 = sand.u32 %s36, 1
        %s238 = scalar_lea.sflag [#allocation3], %s237
        %s239 = sand.u32 %s36, 1
        %s240 = smul.addr %s239, 8
        %s241 = scalar_lea.vmem [#allocation2], %s240
        %p242 = pneg %p49
        %p243 = pneg %p46
        %s244 = sand.u32 %s62, 1
        %s245 = scalar_lea.sflag [#allocation6], %s244
        %s246 = sand.u32 %s62, 1
        %s247 = smul.addr %s246, 8
        %s248 = scalar_lea.vmem [#allocation5], %s247
        %p249 = pneg %p75
        %p250 = pneg %p72
        %p251 = pneg %p101
        %p252 = pneg %p98
        %s253 = sand.u32 %s88, 1
        %s254 = scalar_lea.sflag [#allocation4], %s253
        %s255 = sand.u32 %s88, 1
        %s256 = smul.addr %s255, 8
        %s257 = scalar_lea.vmem [#allocation7], %s256
        %p258 = pneg %p127
        %p259 = pneg %p124
        %s260 = sand.u32 %s28, 1
        %s261 = scalar_lea.sflag [#allocation9], %s260
        %s262 = sand.u32 %s114, 1
        %s263 = smul.addr %s262, 8
        %s264 = scalar_lea.vmem [#allocation8], %s263
        %p265 = pneg %p153
        %p266 = pneg %p150
        %s267 = sand.u32 %s28, 1
        %s268 = scalar_lea.sflag [#allocation9], %s267
        %s269 = sand.u32 %s140, 1
        %s270 = smul.addr %s269, 8
        %s271 = scalar_lea.vmem [#allocation10], %s270
        %v272 = vld [vmem:[%s221] sm:$0xff]
        %v273 = vld [vmem:[%s231] sm:$0xff]
        %vm274 = vcmp.gt.f32.partialorder %v273, 0.0
        %vm275 = vcmp.lt.f32.partialorder %v273, 0.0
        %vm276 = vmor %vm274, %vm275
        %v277 = vxor.u32 %v272, 2147483648
        %v278 = vmul.f32 %v277, 1.442695
        %v279 = vpow.pop %v278
        %v280 = vadd.f32 %v279, 1.0
        %v281 = vrcp.pop %v280
        %v282 = vmul.f32 %v280, %v281
        %v283 = vsub.f32 1.0, %v282
        %v284 = vmul.f32 %v281, %v283
        %v285 = vadd.f32 %v281, %v284
        %vm286 = vweird.f32 %v280
        %vm287 = vweird.f32 %v281
        %vm288 = vmor %vm286, %vm287
        %v289 = vsel %vm288, %v281, %v285
        %v290 = vand.u32 2147483647, %v280
        %vm291 = vcmp.eq.f32.partialorder %v290, 8.507059e+37
        %v292 = vand.u32 %v280, 2147483648
        %v293 = vor.u32 1.1754944e-38, %v292
        %v294 = vsel %vm291, %v293, %v289
        %v295 = vmul.f32 1.0, %v294
        %v296 = vsub.f32 1.0, %v295
        %v297 = vsel %vm274, %v295, %v296
        %v298 = vmax.f32 %v297, 1e-08
        %v299 = vlog2.pop %v298
        %v300 = vmul.f32 %v299, 0.6931472
        %v301 = vsub.f32 0.0, %v300
        %v302 = vsub.f32 1.0, %v297
        %v303 = vmul.f32 %v302, %v302
        %v304 = vmul.f32 %v303, %v302
        %v305 = vmul.f32 %v301, %v304
        %v306 = vsel %vm276, %v305, 0.0
        %v307 = vlaneseq
        %v308 = vshrl.u32 %v307, 7
        %s309 = smul.u32 %s28, 8
        %v310 = vstv %s309
        %v311 = vadd.s32 %v308, %v310
        %vm312 = vcmp.lt.s32.totalorder %v311, 20
        %vm313 = vmand %vm312, %vm274
        %vm314 = vmxor %vm274, 1
        %vm315 = vmand %vm312, %vm314
        %v316 = vsel %vm313, %v306, 0.0
        %v317 = vsel %vm315, %v306, 0.0
        %v318 = vadd.f32 %v316, 0.0
        %v319 = vadd.f32 %v317, 0.0
        %320 = vst [vmem:[%s257] sm:$0xff] %v306
        %321 = vst [vmem:[%s264] sm:$0xff] %v318
        %322 = vst [vmem:[%s271] sm:$0xff] %v319
        %s323 = sand.u32 %s88, 1
        %s324 = scalar_lea.sflag [#allocation4], %s323
        %s325 = sand.u32 %s88, 1
        %s326 = smul.addr %s325, 8
        %s327 = scalar_lea.vmem [#allocation7], %s326
        %s328 = sand.u32 %s28, 1
        %s329 = scalar_lea.sflag [#allocation9], %s328
        %s330 = sand.u32 %s114, 1
        %s331 = smul.addr %s330, 8
        %s332 = scalar_lea.vmem [#allocation8], %s331
        %s333 = sand.u32 %s28, 1
        %s334 = scalar_lea.sflag [#allocation9], %s333
        %s335 = sand.u32 %s140, 1
        %s336 = smul.addr %s335, 8
        %s337 = scalar_lea.vmem [#allocation10], %s336
        // Predicated region
        $region37: #{tpu_custom_call.1} parent=27 // pred_check
          %p338 = pneg %p98
        $region38: #{tpu_custom_call.1} parent=27 // pred_check_branch
          %340 = sbr.rel (%p338) target = $region40
        $region39: #{tpu_custom_call.1} parent=27 // pred_region
          %342 = vsyncadd %s324, 0
          %s343 = smul.addr %s28, 8
          %s344 = scalar_lea.hbm %s2, %s343
          %s346 = sshll.u32 %s327, 4
          %s347 = int_to_ptr.vmem [resolvable:$true] %s346
          %s348 = sshll.u32 %s344, 4
          %s349 = int_to_ptr.hbm [resolvable:$true] %s348
          %351 = dma.vmem_to_hbm [thread:$0]  %s347, 128, %s349, %s324
        $region40: #{tpu_custom_call.1} parent=27 // pred_fallthru
          _
        // Predicated region
        $region41: #{tpu_custom_call.1} parent=27 // pred_check
          %p352 = pneg %p124
        $region42: #{tpu_custom_call.1} parent=27 // pred_check_branch
          %354 = sbr.rel (%p352) target = $region44
        $region43: #{tpu_custom_call.1} parent=27 // pred_region
          %356 = vsyncadd %s329, 0
          %s357 = smul.addr %s28, 8
          %s358 = scalar_lea.hbm %s3, %s357
          %s360 = sshll.u32 %s332, 4
          %s361 = int_to_ptr.vmem [resolvable:$true] %s360
          %s362 = sshll.u32 %s358, 4
          %s363 = int_to_ptr.hbm [resolvable:$true] %s362
          %365 = dma.vmem_to_hbm [thread:$0]  %s361, 128, %s363, %s329
        $region44: #{tpu_custom_call.1} parent=27 // pred_fallthru
          _
        // Predicated region
        $region45: #{tpu_custom_call.1} parent=27 // pred_check
          %p366 = pneg %p150
        $region46: #{tpu_custom_call.1} parent=27 // pred_check_branch
          %368 = sbr.rel (%p366) target = $region48
        $region47: #{tpu_custom_call.1} parent=27 // pred_region
          %370 = vsyncadd %s334, 0
          %s371 = smul.addr %s28, 8
          %s372 = scalar_lea.hbm %s4, %s371
          %s374 = sshll.u32 %s337, 4
          %s375 = int_to_ptr.vmem [resolvable:$true] %s374
          %s376 = sshll.u32 %s372, 4
          %s377 = int_to_ptr.hbm [resolvable:$true] %s376
          %379 = dma.vmem_to_hbm [thread:$0]  %s375, 128, %s377, %s334
        $region48: #{tpu_custom_call.1} parent=27 // pred_fallthru
          _
      $region28: #{tpu_custom_call.1} parent=5 // pred_fallthru
        _
      %p380 = scmp.le.s32.totalorder 2, %s23
      // Predicated region
      $region49: #{tpu_custom_call.1} parent=5 // pred_check
        %p381 = pneg %p380
      $region50: #{tpu_custom_call.1} parent=5 // pred_check_branch
        %383 = sbr.rel (%p381) target = $region52
      $region51: #{tpu_custom_call.1} parent=5 // pred_region
        %s384 = ssub.s32 %s23, 2
        // Predicated region
        $region53: #{tpu_custom_call.1} parent=51 // pred_check
          %p385 = pneg %p104
        $region54: #{tpu_custom_call.1} parent=51 // pred_check_branch
          %387 = sbr.rel (%p385) target = $region56
        $region55: #{tpu_custom_call.1} parent=51 // pred_region
          %s388 = sand.u32 %s89, 1
          %s389 = scalar_lea.sflag [#allocation4], %s388
          %s390 = sand.u32 %s89, 1
          %s391 = smul.addr %s390, 8
          %s392 = scalar_lea.vmem [#allocation7], %s391
          %394 = dma.done %s389, 128
        $region56: #{tpu_custom_call.1} parent=51 // pred_fallthru
          _
        // Predicated region
        $region57: #{tpu_custom_call.1} parent=51 // pred_check
          %p395 = pneg %p130
        $region58: #{tpu_custom_call.1} parent=51 // pred_check_branch
          %397 = sbr.rel (%p395) target = $region60
        $region59: #{tpu_custom_call.1} parent=51 // pred_region
          %s398 = sand.u32 %s29, 1
          %s399 = scalar_lea.sflag [#allocation9], %s398
          %s400 = sand.u32 %s115, 1
          %s401 = smul.addr %s400, 8
          %s402 = scalar_lea.vmem [#allocation8], %s401
          %404 = dma.done %s399, 128
        $region60: #{tpu_custom_call.1} parent=51 // pred_fallthru
          _
        // Predicated region
        $region61: #{tpu_custom_call.1} parent=51 // pred_check
          %p405 = pneg %p156
        $region62: #{tpu_custom_call.1} parent=51 // pred_check_branch
          %407 = sbr.rel (%p405) target = $region64
        $region63: #{tpu_custom_call.1} parent=51 // pred_region
          %s408 = sand.u32 %s29, 1
          %s409 = scalar_lea.sflag [#allocation9], %s408
          %s410 = sand.u32 %s141, 1
          %s411 = smul.addr %s410, 8
          %s412 = scalar_lea.vmem [#allocation10], %s411
          %414 = dma.done %s409, 128
        $region64: #{tpu_custom_call.1} parent=51 // pred_fallthru
          _
      $region52: #{tpu_custom_call.1} parent=5 // pred_fallthru
        _
    $region6: #{tpu_custom_call.1} parent=1 // loop_footer
      %s27 = sadd.s32 1, %s23
    $region7: #{tpu_custom_call.1} parent=1 // loop_footer_branch
      %22 = sbr.rel target = $region3
    $region8: #{tpu_custom_call.1} parent=1 // loop_exit
      _
    %415 = vsyncpa [#allocation3], 1
    %s416 = scalar_lea.sflag [#allocation3], 1
    %417 = vsyncpa %s416, 1
    %418 = vsyncpa [#allocation6], 1
    %s419 = scalar_lea.sflag [#allocation6], 1
    %420 = vsyncpa %s419, 1
    %421 = vsyncpa [#allocation4], 1
    %s422 = scalar_lea.sflag [#allocation4], 1
    %423 = vsyncpa %s422, 1
    %424 = vsyncpa [#allocation9], 1
    %s425 = scalar_lea.sflag [#allocation9], 1
    %426 = vsyncpa %s425, 1

</llo_original>
